<compile_context>
chip_gen: v5e
topology: v5e:2x2
jax: 0.10.0
libtpu: 0.0.40
codegen_flags: <defaults>
</compile_context>

<pallas_src>
import jax
import jax.numpy as jnp
from jax.experimental import pallas as pl
from jax.experimental.pallas import tpu as pltpu

N1, N2, N3 = 70, 50, 35
D_IN, D_OUT = 28 * 28, 10
LANE = 128  # zero-padded feature width of every layer output


def _cdiv(a, b):
    return -(-a // b)


def _round_up(x, m):
    return (x + m - 1) // m * m


def _default_act_dtype():
    """bf16 activation math on chips with bf16 VPU/EUP (v6e / v7x), else f32."""
    try:
        kind = jax.devices()[0].device_kind.lower()
    except Exception:
        return jnp.float32
    return jnp.bfloat16 if ("v6" in kind or "v7" in kind) else jnp.float32


def _sigmoid(v, act_dtype):
    # sigmoid(v) == 0.5*tanh(0.5*v) + 0.5 : a single EUP op, stable for any |v|.
    v = v.astype(act_dtype)
    return jnp.tanh(v * 0.5) * 0.5 + 0.5


def _make_kernel(act_dtype, with_hidden):
    def kernel(x_ref, w1_ref, w2_ref, w3_ref, w4_ref, b_ref, *out_refs):
        if with_hidden:
            z1_ref, z2_ref, z3_ref, y_ref = out_refs
        else:
            (y_ref,) = out_refs

        x = x_ref[...].astype(jnp.bfloat16)      # (TB, 784) bf16 (cast in-kernel)
        b = b_ref[...]                           # (4, 128) f32, read once

        def layer(h, w_ref, k):
            v = jnp.dot(h, w_ref[...], preferred_element_type=jnp.float32)
            v = v + b[k:k + 1]                   # f32 accumulate + f32 bias
            return _sigmoid(v, act_dtype).astype(jnp.bfloat16)

        z1 = layer(x, w1_ref, 0)
        if with_hidden:
            z1_ref[...] = z1
        z2 = layer(z1, w2_ref, 1)
        if with_hidden:
            z2_ref[...] = z2
        z3 = layer(z2, w3_ref, 2)
        if with_hidden:
            z3_ref[...] = z3
        y_ref[...] = jnp.dot(z3, w4_ref[...],
                             preferred_element_type=jnp.float32) + b[3:4]
    return kernel


def _pad_weight(w, in_pad):
    """PyTorch Linear W is (out, in); kernel wants zero-padded (in_pad, 128) bf16."""
    wt = jnp.asarray(w, jnp.float32).T
    wt = jnp.pad(wt, ((0, in_pad - wt.shape[0]), (0, LANE - wt.shape[1])))
    return wt.astype(jnp.bfloat16)


def _pack_params(params):
    (w1, b1), (w2, b2), (w3, b3), (w4, b4) = params
    w1p = _pad_weight(w1, D_IN)
    w2p = _pad_weight(w2, LANE)
    w3p = _pad_weight(w3, LANE)
    w4p = _pad_weight(w4, LANE)
    bp = jnp.stack([jnp.pad(jnp.asarray(b, jnp.float32), (0, LANE - b.shape[0]))
                    for b in (b1, b2, b3, b4)])          # (4, 128) f32
    return w1p, w2p, w3p, w4p, bp


def _choose_batch_tile(B, batch_tile):
    if B <= 8:
        return B                                  # single full-batch block
    n_steps = max(2, _cdiv(B, batch_tile))        # >= 2 steps so both v7x TCs get work
    return min(batch_tile, _round_up(_cdiv(B, n_steps), 8))


def mlp_forward(x, params, *, batch_tile=1024, return_hidden=True, act_dtype=None):
    """x: (B, 1, 28, 28) or (B, 784).
    Returns (Z1, Z2, Z3, Y) with Z's in bf16 and Y in f32, or just Y if
    return_hidden=False (skips all hidden-state HBM writes)."""
    if act_dtype is None:
        act_dtype = _default_act_dtype()

    xf = x.reshape(-1, D_IN)
    if xf.dtype != jnp.float32:
        xf = xf.astype(jnp.float32)
    B = xf.shape[0]

    TB = _choose_batch_tile(B, batch_tile)
    grid = (pl.cdiv(B, TB),)

    w1p, w2p, w3p, w4p, bp = _pack_params(params)

    x_spec = pl.BlockSpec((TB, D_IN), lambda i: (i, 0))
    z_spec = pl.BlockSpec((TB, LANE), lambda i: (i, 0))

    def const(shape):
        # Weights / biases: constant block index -> stay VMEM-resident across steps.
        return pl.BlockSpec(shape, lambda i: (0, 0))

    if return_hidden:
        out_shape = (jax.ShapeDtypeStruct((B, LANE), jnp.bfloat16),
                     jax.ShapeDtypeStruct((B, LANE), jnp.bfloat16),
                     jax.ShapeDtypeStruct((B, LANE), jnp.bfloat16),
                     jax.ShapeDtypeStruct((B, LANE), jnp.float32))
        out_specs = (z_spec, z_spec, z_spec, z_spec)
    else:
        out_shape = jax.ShapeDtypeStruct((B, LANE), jnp.float32)
        out_specs = z_spec

    outs = pl.pallas_call(
        _make_kernel(act_dtype, return_hidden),
        out_shape=out_shape,
        grid=grid,
        in_specs=[x_spec,
                  const((D_IN, LANE)), const((LANE, LANE)),
                  const((LANE, LANE)), const((LANE, LANE)),
                  const((4, LANE))],
        out_specs=out_specs,
        compiler_params=pltpu.CompilerParams(
            dimension_semantics=("parallel",),
            vmem_limit_bytes=32 * 1024 * 1024),
    )(xf, w1p, w2p, w3p, w4p, bp)

    if return_hidden:
        z1p, z2p, z3p, yp = outs
        return z1p[:, :N1], z2p[:, :N2], z3p[:, :N3], yp[:, :D_OUT]
    return outs[:, :D_OUT]


def init_params(key):
    """Deterministic init matching PyTorch Linear shapes (W: (out,in), b: (out,))."""
    dims = [(N1, D_IN), (N2, N1), (N3, N2), (D_OUT, N3)]
    params = []
    for i, (out_d, in_d) in enumerate(dims):
        kw, kb = jax.random.split(jax.random.fold_in(key, i))
        bound = 1.0 / jnp.sqrt(in_d)
        w = jax.random.uniform(kw, (out_d, in_d), jnp.float32, -bound, bound)
        b = jax.random.uniform(kb, (out_d,), jnp.float32, -bound, bound)
        params.append((w, b))
    return params


def ref_forward(x, params, act_dtype):
    """Plain-JAX reference emulating the kernel's bf16 rounding of x / W / pre-act / z."""
    f32 = jnp.float32
    h = x.reshape(-1, D_IN).astype(f32).astype(jnp.bfloat16).astype(f32)
    zs = []
    for (w, b) in params[:3]:
        wt = w.T.astype(jnp.bfloat16).astype(f32)
        v = (h @ wt + b.astype(f32)).astype(act_dtype).astype(f32)
        z = jax.nn.sigmoid(v).astype(jnp.bfloat16).astype(f32)
        zs.append(z)
        h = z
    w4, b4 = params[3]
    y = h @ w4.T.astype(jnp.bfloat16).astype(f32) + b4.astype(f32)
    return zs[0], zs[1], zs[2], y


if __name__ == "__main__":
    key = jax.random.PRNGKey(0)
    kx, kp = jax.random.split(key)
    params = init_params(kp)
    act_dtype = _default_act_dtype()

    # (batch, batch_tile): a tiny single-block case and a multi-step ragged case.
    for case, (B, bt) in enumerate(((2, 1024), (20, 8))):
        x = jax.random.normal(jax.random.fold_in(kx, case), (B, 1, 28, 28), jnp.float32)

        z1, z2, z3, y = jax.block_until_ready(mlp_forward(x, params, batch_tile=bt))
        r1, r2, r3, ry = ref_forward(x, params, act_dtype)

        for got, ref, tol in ((z1, r1, 1e-2), (z2, r2, 1e-2),
                              (z3, r3, 1e-2), (y, ry, 2e-2)):
            assert got.shape == ref.shape, (got.shape, ref.shape)
            err = float(jnp.max(jnp.abs(got.astype(jnp.float32) - ref)))
            assert err < tol, (case, err)

        # Y-only fast path (skips materializing Z1/Z2/Z3 in HBM).
        y_only = jax.block_until_ready(
            mlp_forward(x, params, batch_tile=bt, return_hidden=False))
        err = float(jnp.max(jnp.abs(y_only - ry)))
        assert err < 2e-2, (case, err)

    print("KERNEL_OK")
</pallas_src>

<mosaic_0001>
module attributes {stable_mosaic.version = 11 : i64} {
  func.func @kernel(%arg0: i32, %arg1: memref<2x784xf32, #tpu.memory_space<vmem>>, %arg2: memref<784x128xbf16, #tpu.memory_space<vmem>>, %arg3: memref<128x128xbf16, #tpu.memory_space<vmem>>, %arg4: memref<128x128xbf16, #tpu.memory_space<vmem>>, %arg5: memref<128x128xbf16, #tpu.memory_space<vmem>>, %arg6: memref<4x128xf32, #tpu.memory_space<vmem>>, %arg7: memref<2x128xbf16, #tpu.memory_space<vmem>>, %arg8: memref<2x128xbf16, #tpu.memory_space<vmem>>, %arg9: memref<2x128xbf16, #tpu.memory_space<vmem>>, %arg10: memref<2x128xf32, #tpu.memory_space<vmem>>) attributes {dimension_semantics = [#tpu.dimension_semantics<parallel>], iteration_bounds = array<i64: 1>, scalar_prefetch = 0 : i64, scratch_operands = 0 : i64, tpu.core_type = #tpu.core_type<tc>, window_params = [{transform_indices = @transform_0, window_bounds = array<i64: 2, 784>}, {pipeline_mode = #tpu.pipeline_mode<synchronous>, transform_indices = @transform_1, window_bounds = array<i64: 784, 128>}, {pipeline_mode = #tpu.pipeline_mode<synchronous>, transform_indices = @transform_2, window_bounds = array<i64: 128, 128>}, {pipeline_mode = #tpu.pipeline_mode<synchronous>, transform_indices = @transform_3, window_bounds = array<i64: 128, 128>}, {pipeline_mode = #tpu.pipeline_mode<synchronous>, transform_indices = @transform_4, window_bounds = array<i64: 128, 128>}, {pipeline_mode = #tpu.pipeline_mode<synchronous>, transform_indices = @transform_5, window_bounds = array<i64: 4, 128>}, {transform_indices = @transform_6, window_bounds = array<i64: 2, 128>}, {transform_indices = @transform_7, window_bounds = array<i64: 2, 128>}, {transform_indices = @transform_8, window_bounds = array<i64: 2, 128>}, {transform_indices = @transform_9, window_bounds = array<i64: 2, 128>}]} {
    %c0 = arith.constant 0 : index
    %c0_0 = arith.constant 0 : index
    %0 = vector.load %arg1[%c0, %c0_0] : memref<2x784xf32, #tpu.memory_space<vmem>>, vector<2x784xf32>
    %1 = arith.truncf %0 : vector<2x784xf32> to vector<2x784xbf16>
    %c0_1 = arith.constant 0 : index
    %c0_2 = arith.constant 0 : index
    %2 = vector.load %arg6[%c0_1, %c0_2] : memref<4x128xf32, #tpu.memory_space<vmem>>, vector<4x128xf32>
    %c0_3 = arith.constant 0 : index
    %c0_4 = arith.constant 0 : index
    %3 = vector.load %arg2[%c0_3, %c0_4] : memref<784x128xbf16, #tpu.memory_space<vmem>>, vector<784x128xbf16>
    %cst = arith.constant dense<0.000000e+00> : vector<2x128xf32>
    %4 = tpu.matmul %1, %3, %cst {dimension_numbers = #tpu.dot_dimension_numbers<[1], [0], [0], [1], [0, 0, 1, 1], [], []>} : vector<2x784xbf16>, vector<784x128xbf16>, vector<2x128xf32> -> vector<2x128xf32>
    %5 = vector.extract_strided_slice %2 {offsets = [0, 0], sizes = [1, 128], strides = [1, 1]} : vector<4x128xf32> to vector<1x128xf32>
    %6 = vector.broadcast %5 : vector<1x128xf32> to vector<2x128xf32>
    %7 = arith.addf %4, %6 : vector<2x128xf32>
    %cst_5 = arith.constant 5.000000e-01 : f32
    %8 = vector.broadcast %cst_5 : f32 to vector<2x128xf32>
    %9 = arith.mulf %7, %8 : vector<2x128xf32>
    %10 = math.tanh %9 : vector<2x128xf32>
    %cst_6 = arith.constant 5.000000e-01 : f32
    %11 = vector.broadcast %cst_6 : f32 to vector<2x128xf32>
    %12 = arith.mulf %10, %11 : vector<2x128xf32>
    %cst_7 = arith.constant 5.000000e-01 : f32
    %13 = vector.broadcast %cst_7 : f32 to vector<2x128xf32>
    %14 = arith.addf %12, %13 : vector<2x128xf32>
    %15 = arith.truncf %14 : vector<2x128xf32> to vector<2x128xbf16>
    %c0_8 = arith.constant 0 : index
    %c0_9 = arith.constant 0 : index
    %16 = vector.load %arg7[%c0_8, %c0_9] : memref<2x128xbf16, #tpu.memory_space<vmem>>, vector<2x128xbf16>
    tpu.vector_store %arg7[%c0_8, %c0_9], %15 {strides = array<i32>} : memref<2x128xbf16, #tpu.memory_space<vmem>>, vector<2x128xbf16>,
    %c0_10 = arith.constant 0 : index
    %c0_11 = arith.constant 0 : index
    %17 = vector.load %arg3[%c0_10, %c0_11] : memref<128x128xbf16, #tpu.memory_space<vmem>>, vector<128x128xbf16>
    %cst_12 = arith.constant dense<0.000000e+00> : vector<2x128xf32>
    %18 = tpu.matmul %15, %17, %cst_12 {dimension_numbers = #tpu.dot_dimension_numbers<[1], [0], [0], [1], [0, 0, 1, 1], [], []>} : vector<2x128xbf16>, vector<128x128xbf16>, vector<2x128xf32> -> vector<2x128xf32>
    %19 = vector.extract_strided_slice %2 {offsets = [1, 0], sizes = [1, 128], strides = [1, 1]} : vector<4x128xf32> to vector<1x128xf32>
    %20 = vector.broadcast %19 : vector<1x128xf32> to vector<2x128xf32>
    %21 = arith.addf %18, %20 : vector<2x128xf32>
    %cst_13 = arith.constant 5.000000e-01 : f32
    %22 = vector.broadcast %cst_13 : f32 to vector<2x128xf32>
    %23 = arith.mulf %21, %22 : vector<2x128xf32>
    %24 = math.tanh %23 : vector<2x128xf32>
    %cst_14 = arith.constant 5.000000e-01 : f32
    %25 = vector.broadcast %cst_14 : f32 to vector<2x128xf32>
    %26 = arith.mulf %24, %25 : vector<2x128xf32>
    %cst_15 = arith.constant 5.000000e-01 : f32
    %27 = vector.broadcast %cst_15 : f32 to vector<2x128xf32>
    %28 = arith.addf %26, %27 : vector<2x128xf32>
    %29 = arith.truncf %28 : vector<2x128xf32> to vector<2x128xbf16>
    %c0_16 = arith.constant 0 : index
    %c0_17 = arith.constant 0 : index
    %30 = vector.load %arg8[%c0_16, %c0_17] : memref<2x128xbf16, #tpu.memory_space<vmem>>, vector<2x128xbf16>
    tpu.vector_store %arg8[%c0_16, %c0_17], %29 {strides = array<i32>} : memref<2x128xbf16, #tpu.memory_space<vmem>>, vector<2x128xbf16>,
    %c0_18 = arith.constant 0 : index
    %c0_19 = arith.constant 0 : index
    %31 = vector.load %arg4[%c0_18, %c0_19] : memref<128x128xbf16, #tpu.memory_space<vmem>>, vector<128x128xbf16>
    %cst_20 = arith.constant dense<0.000000e+00> : vector<2x128xf32>
    %32 = tpu.matmul %29, %31, %cst_20 {dimension_numbers = #tpu.dot_dimension_numbers<[1], [0], [0], [1], [0, 0, 1, 1], [], []>} : vector<2x128xbf16>, vector<128x128xbf16>, vector<2x128xf32> -> vector<2x128xf32>
    %33 = vector.extract_strided_slice %2 {offsets = [2, 0], sizes = [1, 128], strides = [1, 1]} : vector<4x128xf32> to vector<1x128xf32>
    %34 = vector.broadcast %33 : vector<1x128xf32> to vector<2x128xf32>
    %35 = arith.addf %32, %34 : vector<2x128xf32>
    %cst_21 = arith.constant 5.000000e-01 : f32
    %36 = vector.broadcast %cst_21 : f32 to vector<2x128xf32>
    %37 = arith.mulf %35, %36 : vector<2x128xf32>
    %38 = math.tanh %37 : vector<2x128xf32>
    %cst_22 = arith.constant 5.000000e-01 : f32
    %39 = vector.broadcast %cst_22 : f32 to vector<2x128xf32>
    %40 = arith.mulf %38, %39 : vector<2x128xf32>
    %cst_23 = arith.constant 5.000000e-01 : f32
    %41 = vector.broadcast %cst_23 : f32 to vector<2x128xf32>
    %42 = arith.addf %40, %41 : vector<2x128xf32>
    %43 = arith.truncf %42 : vector<2x128xf32> to vector<2x128xbf16>
    %c0_24 = arith.constant 0 : index
    %c0_25 = arith.constant 0 : index
    %44 = vector.load %arg9[%c0_24, %c0_25] : memref<2x128xbf16, #tpu.memory_space<vmem>>, vector<2x128xbf16>
    tpu.vector_store %arg9[%c0_24, %c0_25], %43 {strides = array<i32>} : memref<2x128xbf16, #tpu.memory_space<vmem>>, vector<2x128xbf16>,
    %c0_26 = arith.constant 0 : index
    %c0_27 = arith.constant 0 : index
    %45 = vector.load %arg5[%c0_26, %c0_27] : memref<128x128xbf16, #tpu.memory_space<vmem>>, vector<128x128xbf16>
    %cst_28 = arith.constant dense<0.000000e+00> : vector<2x128xf32>
    %46 = tpu.matmul %43, %45, %cst_28 {dimension_numbers = #tpu.dot_dimension_numbers<[1], [0], [0], [1], [0, 0, 1, 1], [], []>} : vector<2x128xbf16>, vector<128x128xbf16>, vector<2x128xf32> -> vector<2x128xf32>
    %47 = vector.extract_strided_slice %2 {offsets = [3, 0], sizes = [1, 128], strides = [1, 1]} : vector<4x128xf32> to vector<1x128xf32>
    %48 = vector.broadcast %47 : vector<1x128xf32> to vector<2x128xf32>
    %49 = arith.addf %46, %48 : vector<2x128xf32>
    %c0_29 = arith.constant 0 : index
    %c0_30 = arith.constant 0 : index
    %50 = vector.load %arg10[%c0_29, %c0_30] : memref<2x128xf32, #tpu.memory_space<vmem>>, vector<2x128xf32>
    tpu.vector_store %arg10[%c0_29, %c0_30], %49 {strides = array<i32>} : memref<2x128xf32, #tpu.memory_space<vmem>>, vector<2x128xf32>,
    return
  }
  func.func @transform_0(%arg0: i32) -> (i32, i32) {
    %c0_i32 = arith.constant 0 : i32
    %c0_i32_0 = arith.constant 0 : i32
    return %arg0, %c0_i32 : i32, i32
  }
  func.func @transform_1(%arg0: i32) -> (i32, i32) {
    %c0_i32 = arith.constant 0 : i32
    %c0_i32_0 = arith.constant 0 : i32
    %c0_i32_1 = arith.constant 0 : i32
    return %c0_i32, %c0_i32_0 : i32, i32
  }
  func.func @transform_2(%arg0: i32) -> (i32, i32) {
    %c0_i32 = arith.constant 0 : i32
    %c0_i32_0 = arith.constant 0 : i32
    %c0_i32_1 = arith.constant 0 : i32
    return %c0_i32, %c0_i32_0 : i32, i32
  }
  func.func @transform_3(%arg0: i32) -> (i32, i32) {
    %c0_i32 = arith.constant 0 : i32
    %c0_i32_0 = arith.constant 0 : i32
    %c0_i32_1 = arith.constant 0 : i32
    return %c0_i32, %c0_i32_0 : i32, i32
  }
  func.func @transform_4(%arg0: i32) -> (i32, i32) {
    %c0_i32 = arith.constant 0 : i32
    %c0_i32_0 = arith.constant 0 : i32
    %c0_i32_1 = arith.constant 0 : i32
    return %c0_i32, %c0_i32_0 : i32, i32
  }
  func.func @transform_5(%arg0: i32) -> (i32, i32) {
    %c0_i32 = arith.constant 0 : i32
    %c0_i32_0 = arith.constant 0 : i32
    %c0_i32_1 = arith.constant 0 : i32
    return %c0_i32, %c0_i32_0 : i32, i32
  }
  func.func @transform_6(%arg0: i32) -> (i32, i32) {
    %c0_i32 = arith.constant 0 : i32
    %c0_i32_0 = arith.constant 0 : i32
    return %arg0, %c0_i32 : i32, i32
  }
  func.func @transform_7(%arg0: i32) -> (i32, i32) {
    %c0_i32 = arith.constant 0 : i32
    %c0_i32_0 = arith.constant 0 : i32
    return %arg0, %c0_i32 : i32, i32
  }
  func.func @transform_8(%arg0: i32) -> (i32, i32) {
    %c0_i32 = arith.constant 0 : i32
    %c0_i32_0 = arith.constant 0 : i32
    return %arg0, %c0_i32 : i32, i32
  }
  func.func @transform_9(%arg0: i32) -> (i32, i32) {
    %c0_i32 = arith.constant 0 : i32
    %c0_i32_0 = arith.constant 0 : i32
    return %arg0, %c0_i32 : i32, i32
  }
}

</mosaic_0001>

<llo_original>
// kernel: tpu_custom_call.1
$region0: #{tpu_custom_call.1}
  #allocation0 [shape = 'u32[]', space=smem, size = 0x4, offset = 0x4, fixed_abs, tag = 'smem constant byte address 0x4 - core index']
  #allocation1 [shape = 'u32[72,128]{1,0:T(1,128)}', space=vmem, size = 0x9000, scoped, tag = 'internal scratch']
  %s0 = inlined_call_operand.hbm [shape: f32[2,784], index: 0, kind: input, shape index: {}]
  %s1 = inlined_call_operand.hbm [shape: bf16[784,128], index: 1, kind: input, shape index: {}]
  %s2 = inlined_call_operand.hbm [shape: bf16[128,128], index: 2, kind: input, shape index: {}]
  %s3 = inlined_call_operand.hbm [shape: bf16[128,128], index: 3, kind: input, shape index: {}]
  %s4 = inlined_call_operand.hbm [shape: bf16[128,128], index: 4, kind: input, shape index: {}]
  %s5 = inlined_call_operand.vmem [shape: f32[4,128], index: 5, kind: input, shape index: {}]
  %s6 = inlined_call_operand.hbm [shape: bf16[2,128], index: 6, kind: output, shape index: {0}]
  %s7 = inlined_call_operand.hbm [shape: bf16[2,128], index: 7, kind: output, shape index: {1}]
  %s8 = inlined_call_operand.hbm [shape: bf16[2,128], index: 8, kind: output, shape index: {2}]
  %s9 = inlined_call_operand.hbm [shape: f32[2,128], index: 9, kind: output, shape index: {3}]
  %10 = xla_tuple %s6, %s7, %s8, %s9
  %s11 = sld [smem:[#allocation0]]
  $region78: #{tpu_custom_call.1} parent=0
    _
  %s13 = ssub.s32 1, %s11
  %s14 = scalar_select 0, %s13, %s11
  $region1: #{tpu_custom_call.1} parent=0
    #allocation2 [shape = 'u8[7168]{0}', space=vmem, size = 0x1c00, scoped, tag = 'input window, operand 0, single buffered']
    #allocation3 [shape = 's32[1]{0}', space=sflag, size = 0x4, scoped, tag = 'scoped memory for tpu_custom_call.1']
    #allocation4 [shape = 's32[1]{0}', space=sflag, size = 0x4, scoped, tag = 'scoped memory for tpu_custom_call.1']
    #allocation5 [shape = 'u8[200704]{0}', space=vmem, size = 0x31000, scoped, tag = 'input window, operand 1, single buffered']
    #allocation6 [shape = 's32[1]{0}', space=sflag, size = 0x4, scoped, tag = 'scoped memory for tpu_custom_call.1']
    #allocation7 [shape = 'u8[32768]{0}', space=vmem, size = 0x8000, scoped, tag = 'input window, operand 2, single buffered']
    #allocation8 [shape = 'u8[32768]{0}', space=vmem, size = 0x8000, scoped, tag = 'input window, operand 3, single buffered']
    #allocation9 [shape = 's32[1]{0}', space=sflag, size = 0x4, scoped, tag = 'scoped memory for tpu_custom_call.1']
    #allocation10 [shape = 'u8[32768]{0}', space=vmem, size = 0x8000, scoped, tag = 'input window, operand 4, single buffered']
    #allocation11 [shape = 'u8[512]{0}', space=vmem, size = 0x400, scoped, tag = 'output window, operand 0, single buffered']
    #allocation12 [shape = 'u8[512]{0}', space=vmem, size = 0x400, scoped, tag = 'output window, operand 1, single buffered']
    #allocation13 [shape = 's32[1]{0}', space=sflag, size = 0x4, scoped, tag = 'scoped memory for tpu_custom_call.1']
    #allocation14 [shape = 'u8[512]{0}', space=vmem, size = 0x400, scoped, tag = 'output window, operand 2, single buffered']
    #allocation15 [shape = 'u8[1024]{0}', space=vmem, size = 0x400, scoped, tag = 'output window, operand 3, single buffered']
    #allocation16 [shape = 's32[1]{0}', space=sflag, size = 0x4, scoped, tag = 'scoped memory for tpu_custom_call.1']
    %15 = vsyncpa [#allocation3], 0
    %16 = vsyncpa [#allocation6], 0
    %17 = vsyncpa [#allocation9], 0
    %18 = vsyncpa [#allocation4], 0
    %19 = vsyncpa [#allocation13], 0
    %20 = vsyncpa [#allocation16], 0
    // Predicated region
    $region2: #{tpu_custom_call.1} parent=1 // pred_check
      _
    $region3: #{tpu_custom_call.1} parent=1 // pred_check_branch
      %22 = sbr.rel (0) target = $region5
    $region4: #{tpu_custom_call.1} parent=1 // pred_region
      %24 = vsyncadd [#allocation3], 0
      %s26 = sshll.u32 %s0, 4
      %s27 = int_to_ptr.hbm [resolvable:$true] %s26
      %s28 = sshll.u32 [#allocation2], 4
      %s29 = int_to_ptr.vmem [resolvable:$true] %s28
      %31 = dma.hbm_to_vmem [thread:$0]  %s27, 224, %s29, [#allocation3]
    $region5: #{tpu_custom_call.1} parent=1 // pred_fallthru
      _
    // Predicated region
    $region6: #{tpu_custom_call.1} parent=1 // pred_check
      _
    $region7: #{tpu_custom_call.1} parent=1 // pred_check_branch
      %33 = sbr.rel (0) target = $region9
    $region8: #{tpu_custom_call.1} parent=1 // pred_region
      %35 = vsyncadd [#allocation6], 0
      %s36 = sshll.u32 %s1, 4
      %s37 = int_to_ptr.hbm [resolvable:$true] %s36
      %s38 = sshll.u32 [#allocation5], 4
      %s39 = int_to_ptr.vmem [resolvable:$true] %s38
      %44 = dma.hbm_to_vmem [thread:$0]  %s37, 6272, %s39, [#allocation6], 64, 64, 4
    $region9: #{tpu_custom_call.1} parent=1 // pred_fallthru
      _
    // Predicated region
    $region10: #{tpu_custom_call.1} parent=1 // pred_check
      _
    $region11: #{tpu_custom_call.1} parent=1 // pred_check_branch
      %46 = sbr.rel (0) target = $region13
    $region12: #{tpu_custom_call.1} parent=1 // pred_region
      %48 = vsyncadd [#allocation6], 0
      %s49 = sshll.u32 %s2, 4
      %s50 = int_to_ptr.hbm [resolvable:$true] %s49
      %s51 = sshll.u32 [#allocation7], 4
      %s52 = int_to_ptr.vmem [resolvable:$true] %s51
      %57 = dma.hbm_to_vmem [thread:$0]  %s50, 1024, %s52, [#allocation6], 64, 64, 4
    $region13: #{tpu_custom_call.1} parent=1 // pred_fallthru
      _
    // Predicated region
    $region14: #{tpu_custom_call.1} parent=1 // pred_check
      _
    $region15: #{tpu_custom_call.1} parent=1 // pred_check_branch
      %59 = sbr.rel (0) target = $region17
    $region16: #{tpu_custom_call.1} parent=1 // pred_region
      %61 = vsyncadd [#allocation9], 0
      %s62 = sshll.u32 %s3, 4
      %s63 = int_to_ptr.hbm [resolvable:$true] %s62
      %s64 = sshll.u32 [#allocation8], 4
      %s65 = int_to_ptr.vmem [resolvable:$true] %s64
      %70 = dma.hbm_to_vmem [thread:$0]  %s63, 1024, %s65, [#allocation9], 64, 64, 4
    $region17: #{tpu_custom_call.1} parent=1 // pred_fallthru
      _
    // Predicated region
    $region18: #{tpu_custom_call.1} parent=1 // pred_check
      _
    $region19: #{tpu_custom_call.1} parent=1 // pred_check_branch
      %72 = sbr.rel (0) target = $region21
    $region20: #{tpu_custom_call.1} parent=1 // pred_region
      %74 = vsyncadd [#allocation9], 0
      %s75 = sshll.u32 %s4, 4
      %s76 = int_to_ptr.hbm [resolvable:$true] %s75
      %s77 = sshll.u32 [#allocation10], 4
      %s78 = int_to_ptr.vmem [resolvable:$true] %s77
      %83 = dma.hbm_to_vmem [thread:$0]  %s76, 1024, %s78, [#allocation9], 64, 64, 4
    $region21: #{tpu_custom_call.1} parent=1 // pred_fallthru
      _
    // Predicated region
    $region22: #{tpu_custom_call.1} parent=1 // pred_check
      _
    $region23: #{tpu_custom_call.1} parent=1 // pred_check_branch
      %85 = sbr.rel (0) target = $region25
    $region24: #{tpu_custom_call.1} parent=1 // pred_region
      _
    $region25: #{tpu_custom_call.1} parent=1 // pred_fallthru
      _
    // Predicated region
    $region26: #{tpu_custom_call.1} parent=1 // pred_check
      _
    $region27: #{tpu_custom_call.1} parent=1 // pred_check_branch
      %87 = sbr.rel (0) target = $region29
    $region28: #{tpu_custom_call.1} parent=1 // pred_region
      %89 = dma.done [#allocation3], 224
    $region29: #{tpu_custom_call.1} parent=1 // pred_fallthru
      _
    // Predicated region
    $region30: #{tpu_custom_call.1} parent=1 // pred_check
      _
    $region31: #{tpu_custom_call.1} parent=1 // pred_check_branch
      %91 = sbr.rel (0) target = $region33
    $region32: #{tpu_custom_call.1} parent=1 // pred_region
      %93 = dma.done [#allocation6], 6272
    $region33: #{tpu_custom_call.1} parent=1 // pred_fallthru
      _
    // Predicated region
    $region34: #{tpu_custom_call.1} parent=1 // pred_check
      _
    $region35: #{tpu_custom_call.1} parent=1 // pred_check_branch
      %95 = sbr.rel (0) target = $region37
    $region36: #{tpu_custom_call.1} parent=1 // pred_region
      %97 = dma.done [#allocation6], 1024
    $region37: #{tpu_custom_call.1} parent=1 // pred_fallthru
      _
    // Predicated region
    $region38: #{tpu_custom_call.1} parent=1 // pred_check
      _
    $region39: #{tpu_custom_call.1} parent=1 // pred_check_branch
      %99 = sbr.rel (0) target = $region41
    $region40: #{tpu_custom_call.1} parent=1 // pred_region
      %101 = dma.done [#allocation9], 1024
    $region41: #{tpu_custom_call.1} parent=1 // pred_fallthru
      _
    // Predicated region
    $region42: #{tpu_custom_call.1} parent=1 // pred_check
      _
    $region43: #{tpu_custom_call.1} parent=1 // pred_check_branch
      %103 = sbr.rel (0) target = $region45
    $region44: #{tpu_custom_call.1} parent=1 // pred_region
      %105 = dma.done [#allocation9], 1024
    $region45: #{tpu_custom_call.1} parent=1 // pred_fallthru
      _
    %v107 = vld [vmem:[#allocation2] sm:$0xff]
    %v108 = vld [vmem:[#allocation2 + $0x8] sm:$0x3f]
    %111 = vst [vmem:[#allocation1] ss:$4 sm:$0xff] %v107
    %s112 = scalar_lea.vmem [#allocation1], 32
    %113 = vst [vmem:[%s112] ss:$4 sm:$0xff] %v108
    %v114 = vld.sshfl [vmem:[#allocation1] sm:$0xff pattern:$0x73625140]
    %v115 = vld.sshfl [vmem:[#allocation1 + $0x8] sm:$0xff pattern:$0x73625140]
    %v116 = vld.sshfl [vmem:[#allocation1 + $0x10] sm:$0xff pattern:$0x73625140]
    %v117 = vld.sshfl [vmem:[#allocation1 + $0x18] sm:$0xff pattern:$0x73625140]
    %v118 = vld.sshfl [vmem:[#allocation1 + $0x20] sm:$0xff pattern:$0x73625140]
    %v119 = vld.sshfl [vmem:[#allocation1 + $0x28] sm:$0xff pattern:$0x73625140]
    %v120 = vld.sshfl [vmem:[#allocation1 + $0x30] sm:$0xff pattern:$0x73625140]
    %v128 = vpack.c.bf16 %v114, %v114
    %v129 = vpack.c.bf16 %v115, %v115
    %v130 = vpack.c.bf16 %v116, %v116
    %v131 = vpack.c.bf16 %v117, %v117
    %v132 = vpack.c.bf16 %v118, %v118
    %v133 = vpack.c.bf16 %v119, %v119
    %v134 = vpack.c.bf16 %v120, %v120
    %v135 = vld [vmem:[%s5] sm:$0xf]
    %v136 = vld [vmem:[#allocation5] sm:$0xf]
    %v137 = vld [vmem:[#allocation5 + $0x4] sm:$0xf]
    %v138 = vld [vmem:[#allocation5 + $0x8] sm:$0xf]
    %v139 = vld [vmem:[#allocation5 + $0xc] sm:$0xf]
    %v140 = vld [vmem:[#allocation5 + $0x10] sm:$0xf]
    %v141 = vld [vmem:[#allocation5 + $0x14] sm:$0xf]
    %v142 = vld [vmem:[#allocation5 + $0x18] sm:$0xf]
    %v143 = vld [vmem:[#allocation5 + $0x1c] sm:$0xf]
    %v144 = vld [vmem:[#allocation5 + $0x20] sm:$0xf]
    %v145 = vld [vmem:[#allocation5 + $0x24] sm:$0xf]
    %v146 = vld [vmem:[#allocation5 + $0x28] sm:$0xf]
    %v147 = vld [vmem:[#allocation5 + $0x2c] sm:$0xf]
    %v148 = vld [vmem:[#allocation5 + $0x30] sm:$0xf]
    %v149 = vld [vmem:[#allocation5 + $0x34] sm:$0xf]
    %v150 = vld [vmem:[#allocation5 + $0x38] sm:$0xf]
    %v151 = vld [vmem:[#allocation5 + $0x3c] sm:$0xf]
    %v152 = vld [vmem:[#allocation5 + $0x40] sm:$0xf]
    %v153 = vld [vmem:[#allocation5 + $0x44] sm:$0xf]
    %v154 = vld [vmem:[#allocation5 + $0x48] sm:$0xf]
    %v155 = vld [vmem:[#allocation5 + $0x4c] sm:$0xf]
    %v156 = vld [vmem:[#allocation5 + $0x50] sm:$0xf]
    %v157 = vld [vmem:[#allocation5 + $0x54] sm:$0xf]
    %v158 = vld [vmem:[#allocation5 + $0x58] sm:$0xf]
    %v159 = vld [vmem:[#allocation5 + $0x5c] sm:$0xf]
    %v160 = vld [vmem:[#allocation5 + $0x60] sm:$0xf]
    %v161 = vld [vmem:[#allocation5 + $0x64] sm:$0xf]
    %v162 = vld [vmem:[#allocation5 + $0x68] sm:$0xf]
    %v163 = vld [vmem:[#allocation5 + $0x6c] sm:$0xf]
    %v164 = vld [vmem:[#allocation5 + $0x70] sm:$0xf]
    %v165 = vld [vmem:[#allocation5 + $0x74] sm:$0xf]
    %v166 = vld [vmem:[#allocation5 + $0x78] sm:$0xf]
    %v167 = vld [vmem:[#allocation5 + $0x7c] sm:$0xf]
    %v168 = vld [vmem:[#allocation5 + $0x80] sm:$0xf]
    %v169 = vld [vmem:[#allocation5 + $0x84] sm:$0xf]
    %v170 = vld [vmem:[#allocation5 + $0x88] sm:$0xf]
    %v171 = vld [vmem:[#allocation5 + $0x8c] sm:$0xf]
    %v172 = vld [vmem:[#allocation5 + $0x90] sm:$0xf]
    %v173 = vld [vmem:[#allocation5 + $0x94] sm:$0xf]
    %v174 = vld [vmem:[#allocation5 + $0x98] sm:$0xf]
    %v175 = vld [vmem:[#allocation5 + $0x9c] sm:$0xf]
    %v176 = vld [vmem:[#allocation5 + $0xa0] sm:$0xf]
    %v177 = vld [vmem:[#allocation5 + $0xa4] sm:$0xf]
    %v178 = vld [vmem:[#allocation5 + $0xa8] sm:$0xf]
    %v179 = vld [vmem:[#allocation5 + $0xac] sm:$0xf]
    %v180 = vld [vmem:[#allocation5 + $0xb0] sm:$0xf]
    %v181 = vld [vmem:[#allocation5 + $0xb4] sm:$0xf]
    %v182 = vld [vmem:[#allocation5 + $0xb8] sm:$0xf]
    %v183 = vld [vmem:[#allocation5 + $0xbc] sm:$0xf]
    %v184 = vld [vmem:[#allocation5 + $0xc0] sm:$0xf]
    %v185 = vld [vmem:[#allocation5 + $0xc4] sm:$0xf]
    %v186 = vld [vmem:[#allocation5 + $0xc8] sm:$0xf]
    %v187 = vld [vmem:[#allocation5 + $0xcc] sm:$0xf]
    %v188 = vld [vmem:[#allocation5 + $0xd0] sm:$0xf]
    %v189 = vld [vmem:[#allocation5 + $0xd4] sm:$0xf]
    %v190 = vld [vmem:[#allocation5 + $0xd8] sm:$0xf]
    %v191 = vld [vmem:[#allocation5 + $0xdc] sm:$0xf]
    %v192 = vld [vmem:[#allocation5 + $0xe0] sm:$0xf]
    %v193 = vld [vmem:[#allocation5 + $0xe4] sm:$0xf]
    %v194 = vld [vmem:[#allocation5 + $0xe8] sm:$0xf]
    %v195 = vld [vmem:[#allocation5 + $0xec] sm:$0xf]
    %v196 = vld [vmem:[#allocation5 + $0xf0] sm:$0xf]
    %v197 = vld [vmem:[#allocation5 + $0xf4] sm:$0xf]
    %v198 = vld [vmem:[#allocation5 + $0xf8] sm:$0xf]
    %v199 = vld [vmem:[#allocation5 + $0xfc] sm:$0xf]
    %v200 = vld [vmem:[#allocation5 + $0x100] sm:$0xf]
    %v201 = vld [vmem:[#allocation5 + $0x104] sm:$0xf]
    %v202 = vld [vmem:[#allocation5 + $0x108] sm:$0xf]
    %v203 = vld [vmem:[#allocation5 + $0x10c] sm:$0xf]
    %v204 = vld [vmem:[#allocation5 + $0x110] sm:$0xf]
    %v205 = vld [vmem:[#allocation5 + $0x114] sm:$0xf]
    %v206 = vld [vmem:[#allocation5 + $0x118] sm:$0xf]
    %v207 = vld [vmem:[#allocation5 + $0x11c] sm:$0xf]
    %v208 = vld [vmem:[#allocation5 + $0x120] sm:$0xf]
    %v209 = vld [vmem:[#allocation5 + $0x124] sm:$0xf]
    %v210 = vld [vmem:[#allocation5 + $0x128] sm:$0xf]
    %v211 = vld [vmem:[#allocation5 + $0x12c] sm:$0xf]
    %v212 = vld [vmem:[#allocation5 + $0x130] sm:$0xf]
    %v213 = vld [vmem:[#allocation5 + $0x134] sm:$0xf]
    %v214 = vld [vmem:[#allocation5 + $0x138] sm:$0xf]
    %v215 = vld [vmem:[#allocation5 + $0x13c] sm:$0xf]
    %v216 = vld [vmem:[#allocation5 + $0x140] sm:$0xf]
    %v217 = vld [vmem:[#allocation5 + $0x144] sm:$0xf]
    %v218 = vld [vmem:[#allocation5 + $0x148] sm:$0xf]
    %v219 = vld [vmem:[#allocation5 + $0x14c] sm:$0xf]
    %v220 = vld [vmem:[#allocation5 + $0x150] sm:$0xf]
    %v221 = vld [vmem:[#allocation5 + $0x154] sm:$0xf]
    %v222 = vld [vmem:[#allocation5 + $0x158] sm:$0xf]
    %v223 = vld [vmem:[#allocation5 + $0x15c] sm:$0xf]
    %v224 = vld [vmem:[#allocation5 + $0x160] sm:$0xf]
    %v225 = vld [vmem:[#allocation5 + $0x164] sm:$0xf]
    %v226 = vld [vmem:[#allocation5 + $0x168] sm:$0xf]
    %v227 = vld [vmem:[#allocation5 + $0x16c] sm:$0xf]
    %v228 = vld [vmem:[#allocation5 + $0x170] sm:$0xf]
    %v229 = vld [vmem:[#allocation5 + $0x174] sm:$0xf]
    %v230 = vld [vmem:[#allocation5 + $0x178] sm:$0xf]
    %v231 = vld [vmem:[#allocation5 + $0x17c] sm:$0xf]
    %v232 = vld [vmem:[#allocation5 + $0x180] sm:$0xf]
    %v233 = vld [vmem:[#allocation5 + $0x184] sm:$0xf]
    %v234 = vperm.slane %v135, 0
    %v333 = vunpack.c.l.b16 %v136
    %v334 = vunpack.c.l.b16 %v137
    %v335 = vunpack.c.l.b16 %v138
    %v336 = vunpack.c.l.b16 %v139
    %v337 = vunpack.c.l.b16 %v140
    %v338 = vunpack.c.l.b16 %v141
    %v339 = vunpack.c.l.b16 %v142
    %v340 = vunpack.c.l.b16 %v143
    %v341 = vunpack.c.l.b16 %v144
    %v342 = vunpack.c.l.b16 %v145
    %v343 = vunpack.c.l.b16 %v146
    %v344 = vunpack.c.l.b16 %v147
    %v345 = vunpack.c.l.b16 %v148
    %v346 = vunpack.c.l.b16 %v149
    %v347 = vunpack.c.l.b16 %v150
    %v348 = vunpack.c.l.b16 %v151
    %v349 = vunpack.c.l.b16 %v152
    %v350 = vunpack.c.l.b16 %v153
    %v351 = vunpack.c.l.b16 %v154
    %v352 = vunpack.c.l.b16 %v155
    %v353 = vunpack.c.l.b16 %v156
    %v354 = vunpack.c.l.b16 %v157
    %v355 = vunpack.c.l.b16 %v158
    %v356 = vunpack.c.l.b16 %v159
    %v357 = vunpack.c.l.b16 %v160
    %v358 = vunpack.c.l.b16 %v161
    %v359 = vunpack.c.l.b16 %v162
    %v360 = vunpack.c.l.b16 %v163
    %v361 = vunpack.c.l.b16 %v164
    %v362 = vunpack.c.l.b16 %v165
    %v363 = vunpack.c.l.b16 %v166
    %v364 = vunpack.c.l.b16 %v167
    %v365 = vunpack.c.l.b16 %v168
    %v366 = vunpack.c.l.b16 %v169
    %v367 = vunpack.c.l.b16 %v170
    %v368 = vunpack.c.l.b16 %v171
    %v369 = vunpack.c.l.b16 %v172
    %v370 = vunpack.c.l.b16 %v173
    %v371 = vunpack.c.l.b16 %v174
    %v372 = vunpack.c.l.b16 %v175
    %v373 = vunpack.c.l.b16 %v176
    %v374 = vunpack.c.l.b16 %v177
    %v375 = vunpack.c.l.b16 %v178
    %v376 = vunpack.c.l.b16 %v179
    %v377 = vunpack.c.l.b16 %v180
    %v378 = vunpack.c.l.b16 %v181
    %v379 = vunpack.c.l.b16 %v182
    %v380 = vunpack.c.l.b16 %v183
    %v381 = vunpack.c.l.b16 %v184
    %v382 = vunpack.c.l.b16 %v185
    %v383 = vunpack.c.l.b16 %v186
    %v384 = vunpack.c.l.b16 %v187
    %v385 = vunpack.c.l.b16 %v188
    %v386 = vunpack.c.l.b16 %v189
    %v387 = vunpack.c.l.b16 %v190
    %v388 = vunpack.c.l.b16 %v191
    %v389 = vunpack.c.l.b16 %v192
    %v390 = vunpack.c.l.b16 %v193
    %v391 = vunpack.c.l.b16 %v194
    %v392 = vunpack.c.l.b16 %v195
    %v393 = vunpack.c.l.b16 %v196
    %v394 = vunpack.c.l.b16 %v197
    %v395 = vunpack.c.l.b16 %v198
    %v396 = vunpack.c.l.b16 %v199
    %v397 = vunpack.c.l.b16 %v200
    %v398 = vunpack.c.l.b16 %v201
    %v399 = vunpack.c.l.b16 %v202
    %v400 = vunpack.c.l.b16 %v203
    %v401 = vunpack.c.l.b16 %v204
    %v402 = vunpack.c.l.b16 %v205
    %v403 = vunpack.c.l.b16 %v206
    %v404 = vunpack.c.l.b16 %v207
    %v405 = vunpack.c.l.b16 %v208
    %v406 = vunpack.c.l.b16 %v209
    %v407 = vunpack.c.l.b16 %v210
    %v408 = vunpack.c.l.b16 %v211
    %v409 = vunpack.c.l.b16 %v212
    %v410 = vunpack.c.l.b16 %v213
    %v411 = vunpack.c.l.b16 %v214
    %v412 = vunpack.c.l.b16 %v215
    %v413 = vunpack.c.l.b16 %v216
    %v414 = vunpack.c.l.b16 %v217
    %v415 = vunpack.c.l.b16 %v218
    %v416 = vunpack.c.l.b16 %v219
    %v417 = vunpack.c.l.b16 %v220
    %v418 = vunpack.c.l.b16 %v221
    %v419 = vunpack.c.l.b16 %v222
    %v420 = vunpack.c.l.b16 %v223
    %v421 = vunpack.c.l.b16 %v224
    %v422 = vunpack.c.l.b16 %v225
    %v423 = vunpack.c.l.b16 %v226
    %v424 = vunpack.c.l.b16 %v227
    %v425 = vunpack.c.l.b16 %v228
    %v426 = vunpack.c.l.b16 %v229
    %v427 = vunpack.c.l.b16 %v230
    %v428 = vunpack.c.l.b16 %v231
    %v429 = vunpack.c.l.b16 %v232
    %v430 = vunpack.c.l.b16 %v233
    %v431 = vpack.c.b16 %v334, %v333
    %v432 = vpack.c.b16 %v336, %v335
    %v433 = vpack.c.b16 %v338, %v337
    %v434 = vpack.c.b16 %v340, %v339
    %v435 = vpack.c.b16 %v342, %v341
    %v436 = vpack.c.b16 %v344, %v343
    %v437 = vpack.c.b16 %v346, %v345
    %v438 = vpack.c.b16 %v348, %v347
    %v439 = vpack.c.b16 %v350, %v349
    %v440 = vpack.c.b16 %v352, %v351
    %v441 = vpack.c.b16 %v354, %v353
    %v442 = vpack.c.b16 %v356, %v355
    %v443 = vpack.c.b16 %v358, %v357
    %v444 = vpack.c.b16 %v360, %v359
    %v445 = vpack.c.b16 %v362, %v361
    %v446 = vpack.c.b16 %v364, %v363
    %v447 = vpack.c.b16 %v366, %v365
    %v448 = vpack.c.b16 %v368, %v367
    %v449 = vpack.c.b16 %v370, %v369
    %v450 = vpack.c.b16 %v372, %v371
    %v451 = vpack.c.b16 %v374, %v373
    %v452 = vpack.c.b16 %v376, %v375
    %v453 = vpack.c.b16 %v378, %v377
    %v454 = vpack.c.b16 %v380, %v379
    %v455 = vpack.c.b16 %v382, %v381
    %v456 = vpack.c.b16 %v384, %v383
    %v457 = vpack.c.b16 %v386, %v385
    %v458 = vpack.c.b16 %v388, %v387
    %v459 = vpack.c.b16 %v390, %v389
    %v460 = vpack.c.b16 %v392, %v391
    %v461 = vpack.c.b16 %v394, %v393
    %v462 = vpack.c.b16 %v396, %v395
    %v463 = vpack.c.b16 %v398, %v397
    %v464 = vpack.c.b16 %v400, %v399
    %v465 = vpack.c.b16 %v402, %v401
    %v466 = vpack.c.b16 %v404, %v403
    %v467 = vpack.c.b16 %v406, %v405
    %v468 = vpack.c.b16 %v408, %v407
    %v469 = vpack.c.b16 %v410, %v409
    %v470 = vpack.c.b16 %v412, %v411
    %v471 = vpack.c.b16 %v414, %v413
    %v472 = vpack.c.b16 %v416, %v415
    %v473 = vpack.c.b16 %v418, %v417
    %v474 = vpack.c.b16 %v420, %v419
    %v475 = vpack.c.b16 %v422, %v421
    %v476 = vpack.c.b16 %v424, %v423
    %v477 = vpack.c.b16 %v426, %v425
    %v478 = vpack.c.b16 %v428, %v427
    %v479 = vpack.c.b16 %v430, %v429
    %vm529 = vcmask 130048
    %v531 = vsel %vm529, %v134, 0
    %533 = vmatpush.bf16.msra.mxu0 %v438
    %534 = vmatpush.bf16.msra.mxu0 %v437
    %535 = vmatpush.bf16.msra.mxu0 %v436
    %536 = vmatpush.bf16.msra.mxu0 %v435
    %537 = vmatpush.bf16.msra.mxu0 %v434
    %538 = vmatpush.bf16.msra.mxu0 %v433
    %539 = vmatpush.bf16.msra.mxu0 %v432
    %540 = vmatpush.bf16.msra.mxu0 %v431
    %541 = vmatmul.bf16.gmra.mxu0 %v128
    %v542 = vpop.f32.mrf.mxu0
    %v543 = vadd.f32 %v234, %v542
    %v544 = vpop.f32.mrf.mxu0
    %545 = vdwg.mxu0
    %546 = vmatpush.bf16.msra.mxu0 %v446
    %547 = vmatpush.bf16.msra.mxu0 %v445
    %548 = vmatpush.bf16.msra.mxu0 %v444
    %549 = vmatpush.bf16.msra.mxu0 %v443
    %550 = vmatpush.bf16.msra.mxu0 %v442
    %551 = vmatpush.bf16.msra.mxu0 %v441
    %552 = vmatpush.bf16.msra.mxu0 %v440
    %553 = vmatpush.bf16.msra.mxu0 %v439
    %554 = vmatmul.bf16.gmra.mxu0 %v129
    %v555 = vpop.f32.mrf.mxu0
    %v556 = vadd.f32 %v543, %v555
    %v557 = vpop.f32.mrf.mxu0
    %558 = vdwg.mxu0
    %559 = vmatpush.bf16.msra.mxu0 %v454
    %560 = vmatpush.bf16.msra.mxu0 %v453
    %561 = vmatpush.bf16.msra.mxu0 %v452
    %562 = vmatpush.bf16.msra.mxu0 %v451
    %563 = vmatpush.bf16.msra.mxu0 %v450
    %564 = vmatpush.bf16.msra.mxu0 %v449
    %565 = vmatpush.bf16.msra.mxu0 %v448
    %566 = vmatpush.bf16.msra.mxu0 %v447
    %567 = vmatmul.bf16.gmra.mxu0 %v130
    %v568 = vpop.f32.mrf.mxu0
    %v569 = vadd.f32 %v556, %v568
    %v570 = vpop.f32.mrf.mxu0
    %571 = vdwg.mxu0
    %572 = vmatpush.bf16.msra.mxu0 %v462
    %573 = vmatpush.bf16.msra.mxu0 %v461
    %574 = vmatpush.bf16.msra.mxu0 %v460
    %575 = vmatpush.bf16.msra.mxu0 %v459
    %576 = vmatpush.bf16.msra.mxu0 %v458
    %577 = vmatpush.bf16.msra.mxu0 %v457
    %578 = vmatpush.bf16.msra.mxu0 %v456
    %579 = vmatpush.bf16.msra.mxu0 %v455
    %580 = vmatmul.bf16.gmra.mxu0 %v131
    %v581 = vpop.f32.mrf.mxu0
    %v582 = vadd.f32 %v569, %v581
    %v583 = vpop.f32.mrf.mxu0
    %584 = vdwg.mxu0
    %585 = vmatpush.bf16.msra.mxu0 %v470
    %586 = vmatpush.bf16.msra.mxu0 %v469
    %587 = vmatpush.bf16.msra.mxu0 %v468
    %588 = vmatpush.bf16.msra.mxu0 %v467
    %589 = vmatpush.bf16.msra.mxu0 %v466
    %590 = vmatpush.bf16.msra.mxu0 %v465
    %591 = vmatpush.bf16.msra.mxu0 %v464
    %592 = vmatpush.bf16.msra.mxu0 %v463
    %593 = vmatmul.bf16.gmra.mxu0 %v132
    %v594 = vpop.f32.mrf.mxu0
    %v595 = vadd.f32 %v582, %v594
    %v596 = vpop.f32.mrf.mxu0
    %597 = vdwg.mxu0
    %598 = vmatpush.bf16.msra.mxu0 %v478
    %599 = vmatpush.bf16.msra.mxu0 %v477
    %600 = vmatpush.bf16.msra.mxu0 %v476
    %601 = vmatpush.bf16.msra.mxu0 %v475
    %602 = vmatpush.bf16.msra.mxu0 %v474
    %603 = vmatpush.bf16.msra.mxu0 %v473
    %604 = vmatpush.bf16.msra.mxu0 %v472
    %605 = vmatpush.bf16.msra.mxu0 %v471
    %606 = vmatmul.bf16.gmra.mxu0 %v133
    %v607 = vpop.f32.mrf.mxu0
    %v608 = vadd.f32 %v595, %v607
    %v609 = vpop.f32.mrf.mxu0
    %610 = vdwg.mxu0
    %611 = vmatpush.bf16.msra.mxu0 0
    %612 = vmatpush.bf16.msra.mxu0 0
    %613 = vmatpush.bf16.msra.mxu0 0
    %614 = vmatpush.bf16.msra.mxu0 0
    %615 = vmatpush.bf16.msra.mxu0 0
    %616 = vmatpush.bf16.msra.mxu0 0
    %617 = vmatpush.bf16.msra.mxu0 0
    %618 = vmatpush.bf16.msra.mxu0 %v479
    %619 = vmatmul.bf16.gmra.mxu0 %v531
    %v620 = vpop.f32.mrf.mxu0
    %v621 = vadd.f32 %v608, %v620
    %v622 = vpop.f32.mrf.mxu0
    %623 = vdwg.mxu0
    %v624 = vmul.f32 %v621, 0.5
    %v625 = vtanh.pop %v624
    %v626 = vmul.f32 %v625, 0.5
    %v627 = vadd.f32 %v626, 0.5
    %v628 = vpack.c.bf16 %v627, %v627
    %629 = vst [vmem:[#allocation11] sm:$0x1] %v628
    %v630 = vld [vmem:[#allocation7] sm:$0xf]
    %v631 = vld [vmem:[#allocation7 + $0x4] sm:$0xf]
    %v632 = vld [vmem:[#allocation7 + $0x8] sm:$0xf]
    %v633 = vld [vmem:[#allocation7 + $0xc] sm:$0xf]
    %v634 = vld [vmem:[#allocation7 + $0x10] sm:$0xf]
    %v635 = vld [vmem:[#allocation7 + $0x14] sm:$0xf]
    %v636 = vld [vmem:[#allocation7 + $0x18] sm:$0xf]
    %v637 = vld [vmem:[#allocation7 + $0x1c] sm:$0xf]
    %v638 = vld [vmem:[#allocation7 + $0x20] sm:$0xf]
    %v639 = vld [vmem:[#allocation7 + $0x24] sm:$0xf]
    %v640 = vld [vmem:[#allocation7 + $0x28] sm:$0xf]
    %v641 = vld [vmem:[#allocation7 + $0x2c] sm:$0xf]
    %v642 = vld [vmem:[#allocation7 + $0x30] sm:$0xf]
    %v643 = vld [vmem:[#allocation7 + $0x34] sm:$0xf]
    %v644 = vld [vmem:[#allocation7 + $0x38] sm:$0xf]
    %v645 = vld [vmem:[#allocation7 + $0x3c] sm:$0xf]
    %v646 = vperm.slane %v135, 1
    %v663 = vunpack.c.l.b16 %v630
    %v664 = vunpack.c.l.b16 %v631
    %v665 = vunpack.c.l.b16 %v632
    %v666 = vunpack.c.l.b16 %v633
    %v667 = vunpack.c.l.b16 %v634
    %v668 = vunpack.c.l.b16 %v635
    %v669 = vunpack.c.l.b16 %v636
    %v670 = vunpack.c.l.b16 %v637
    %v671 = vunpack.c.l.b16 %v638
    %v672 = vunpack.c.l.b16 %v639
    %v673 = vunpack.c.l.b16 %v640
    %v674 = vunpack.c.l.b16 %v641
    %v675 = vunpack.c.l.b16 %v642
    %v676 = vunpack.c.l.b16 %v643
    %v677 = vunpack.c.l.b16 %v644
    %v678 = vunpack.c.l.b16 %v645
    %v679 = vpack.c.b16 %v664, %v663
    %v680 = vpack.c.b16 %v666, %v665
    %v681 = vpack.c.b16 %v668, %v667
    %v682 = vpack.c.b16 %v670, %v669
    %v683 = vpack.c.b16 %v672, %v671
    %v684 = vpack.c.b16 %v674, %v673
    %v685 = vpack.c.b16 %v676, %v675
    %v686 = vpack.c.b16 %v678, %v677
    %695 = vmatpush.bf16.msra.mxu0 %v686
    %696 = vmatpush.bf16.msra.mxu0 %v685
    %697 = vmatpush.bf16.msra.mxu0 %v684
    %698 = vmatpush.bf16.msra.mxu0 %v683
    %699 = vmatpush.bf16.msra.mxu0 %v682
    %700 = vmatpush.bf16.msra.mxu0 %v681
    %701 = vmatpush.bf16.msra.mxu0 %v680
    %702 = vmatpush.bf16.msra.mxu0 %v679
    %703 = vmatmul.bf16.gmra.mxu0 %v628
    %v704 = vpop.f32.mrf.mxu0
    %v705 = vadd.f32 %v646, %v704
    %v706 = vpop.f32.mrf.mxu0
    %707 = vdwg.mxu0
    %v708 = vmul.f32 %v705, 0.5
    %v709 = vtanh.pop %v708
    %v710 = vmul.f32 %v709, 0.5
    %v711 = vadd.f32 %v710, 0.5
    %v712 = vpack.c.bf16 %v711, %v711
    %713 = vst [vmem:[#allocation12] sm:$0x1] %v712
    %v714 = vld [vmem:[#allocation8] sm:$0xf]
    %v715 = vld [vmem:[#allocation8 + $0x4] sm:$0xf]
    %v716 = vld [vmem:[#allocation8 + $0x8] sm:$0xf]
    %v717 = vld [vmem:[#allocation8 + $0xc] sm:$0xf]
    %v718 = vld [vmem:[#allocation8 + $0x10] sm:$0xf]
    %v719 = vld [vmem:[#allocation8 + $0x14] sm:$0xf]
    %v720 = vld [vmem:[#allocation8 + $0x18] sm:$0xf]
    %v721 = vld [vmem:[#allocation8 + $0x1c] sm:$0xf]
    %v722 = vld [vmem:[#allocation8 + $0x20] sm:$0xf]
    %v723 = vld [vmem:[#allocation8 + $0x24] sm:$0xf]
    %v724 = vld [vmem:[#allocation8 + $0x28] sm:$0xf]
    %v725 = vld [vmem:[#allocation8 + $0x2c] sm:$0xf]
    %v726 = vld [vmem:[#allocation8 + $0x30] sm:$0xf]
    %v727 = vld [vmem:[#allocation8 + $0x34] sm:$0xf]
    %v728 = vld [vmem:[#allocation8 + $0x38] sm:$0xf]
    %v729 = vld [vmem:[#allocation8 + $0x3c] sm:$0xf]
    %v730 = vperm.slane %v135, 2
    %v747 = vunpack.c.l.b16 %v714
    %v748 = vunpack.c.l.b16 %v715
    %v749 = vunpack.c.l.b16 %v716
    %v750 = vunpack.c.l.b16 %v717
    %v751 = vunpack.c.l.b16 %v718
    %v752 = vunpack.c.l.b16 %v719
    %v753 = vunpack.c.l.b16 %v720
    %v754 = vunpack.c.l.b16 %v721
    %v755 = vunpack.c.l.b16 %v722
    %v756 = vunpack.c.l.b16 %v723
    %v757 = vunpack.c.l.b16 %v724
    %v758 = vunpack.c.l.b16 %v725
    %v759 = vunpack.c.l.b16 %v726
    %v760 = vunpack.c.l.b16 %v727
    %v761 = vunpack.c.l.b16 %v728
    %v762 = vunpack.c.l.b16 %v729
    %v763 = vpack.c.b16 %v748, %v747
    %v764 = vpack.c.b16 %v750, %v749
    %v765 = vpack.c.b16 %v752, %v751
    %v766 = vpack.c.b16 %v754, %v753
    %v767 = vpack.c.b16 %v756, %v755
    %v768 = vpack.c.b16 %v758, %v757
    %v769 = vpack.c.b16 %v760, %v759
    %v770 = vpack.c.b16 %v762, %v761
    %779 = vmatpush.bf16.msra.mxu0 %v770
    %780 = vmatpush.bf16.msra.mxu0 %v769
    %781 = vmatpush.bf16.msra.mxu0 %v768
    %782 = vmatpush.bf16.msra.mxu0 %v767
    %783 = vmatpush.bf16.msra.mxu0 %v766
    %784 = vmatpush.bf16.msra.mxu0 %v765
    %785 = vmatpush.bf16.msra.mxu0 %v764
    %786 = vmatpush.bf16.msra.mxu0 %v763
    %787 = vmatmul.bf16.gmra.mxu0 %v712
    %v788 = vpop.f32.mrf.mxu0
    %v789 = vadd.f32 %v730, %v788
    %v790 = vpop.f32.mrf.mxu0
    %791 = vdwg.mxu0
    %v792 = vmul.f32 %v789, 0.5
    %v793 = vtanh.pop %v792
    %v794 = vmul.f32 %v793, 0.5
    %v795 = vadd.f32 %v794, 0.5
    %v796 = vpack.c.bf16 %v795, %v795
    %797 = vst [vmem:[#allocation14] sm:$0x1] %v796
    %v798 = vld [vmem:[#allocation10] sm:$0xf]
    %v799 = vld [vmem:[#allocation10 + $0x4] sm:$0xf]
    %v800 = vld [vmem:[#allocation10 + $0x8] sm:$0xf]
    %v801 = vld [vmem:[#allocation10 + $0xc] sm:$0xf]
    %v802 = vld [vmem:[#allocation10 + $0x10] sm:$0xf]
    %v803 = vld [vmem:[#allocation10 + $0x14] sm:$0xf]
    %v804 = vld [vmem:[#allocation10 + $0x18] sm:$0xf]
    %v805 = vld [vmem:[#allocation10 + $0x1c] sm:$0xf]
    %v806 = vld [vmem:[#allocation10 + $0x20] sm:$0xf]
    %v807 = vld [vmem:[#allocation10 + $0x24] sm:$0xf]
    %v808 = vld [vmem:[#allocation10 + $0x28] sm:$0xf]
    %v809 = vld [vmem:[#allocation10 + $0x2c] sm:$0xf]
    %v810 = vld [vmem:[#allocation10 + $0x30] sm:$0xf]
    %v811 = vld [vmem:[#allocation10 + $0x34] sm:$0xf]
    %v812 = vld [vmem:[#allocation10 + $0x38] sm:$0xf]
    %v813 = vld [vmem:[#allocation10 + $0x3c] sm:$0xf]
    %v814 = vperm.slane %v135, 3
    %v831 = vunpack.c.l.b16 %v798
    %v832 = vunpack.c.l.b16 %v799
    %v833 = vunpack.c.l.b16 %v800
    %v834 = vunpack.c.l.b16 %v801
    %v835 = vunpack.c.l.b16 %v802
    %v836 = vunpack.c.l.b16 %v803
    %v837 = vunpack.c.l.b16 %v804
    %v838 = vunpack.c.l.b16 %v805
    %v839 = vunpack.c.l.b16 %v806
    %v840 = vunpack.c.l.b16 %v807
    %v841 = vunpack.c.l.b16 %v808
    %v842 = vunpack.c.l.b16 %v809
    %v843 = vunpack.c.l.b16 %v810
    %v844 = vunpack.c.l.b16 %v811
    %v845 = vunpack.c.l.b16 %v812
    %v846 = vunpack.c.l.b16 %v813
    %v847 = vpack.c.b16 %v832, %v831
    %v848 = vpack.c.b16 %v834, %v833
    %v849 = vpack.c.b16 %v836, %v835
    %v850 = vpack.c.b16 %v838, %v837
    %v851 = vpack.c.b16 %v840, %v839
    %v852 = vpack.c.b16 %v842, %v841
    %v853 = vpack.c.b16 %v844, %v843
    %v854 = vpack.c.b16 %v846, %v845
    %863 = vmatpush.bf16.msra.mxu0 %v854
    %864 = vmatpush.bf16.msra.mxu0 %v853
    %865 = vmatpush.bf16.msra.mxu0 %v852
    %866 = vmatpush.bf16.msra.mxu0 %v851
    %867 = vmatpush.bf16.msra.mxu0 %v850
    %868 = vmatpush.bf16.msra.mxu0 %v849
    %869 = vmatpush.bf16.msra.mxu0 %v848
    %870 = vmatpush.bf16.msra.mxu0 %v847
    %871 = vmatmul.bf16.gmra.mxu0 %v796
    %v872 = vpop.f32.mrf.mxu0
    %v873 = vadd.f32 %v814, %v872
    %v874 = vpop.f32.mrf.mxu0
    %875 = vdwg.mxu0
    %876 = vst [vmem:[#allocation15] sm:$0x3] %v873
    // Predicated region
    $region46: #{tpu_custom_call.1} parent=1 // pred_check
      _
    $region47: #{tpu_custom_call.1} parent=1 // pred_check_branch
      %878 = sbr.rel (0) target = $region49
    $region48: #{tpu_custom_call.1} parent=1 // pred_region
      %880 = vsyncadd [#allocation4], 0
      %s882 = sshll.u32 [#allocation11], 4
      %s883 = int_to_ptr.vmem [resolvable:$true] %s882
      %s884 = sshll.u32 %s6, 4
      %s885 = int_to_ptr.hbm [resolvable:$true] %s884
      %887 = dma.vmem_to_hbm [thread:$0]  %s883, 16, %s885, [#allocation4]
    $region49: #{tpu_custom_call.1} parent=1 // pred_fallthru
      _
    // Predicated region
    $region50: #{tpu_custom_call.1} parent=1 // pred_check
      _
    $region51: #{tpu_custom_call.1} parent=1 // pred_check_branch
      %889 = sbr.rel (0) target = $region53
    $region52: #{tpu_custom_call.1} parent=1 // pred_region
      %891 = vsyncadd [#allocation13], 0
      %s893 = sshll.u32 [#allocation12], 4
      %s894 = int_to_ptr.vmem [resolvable:$true] %s893
      %s895 = sshll.u32 %s7, 4
      %s896 = int_to_ptr.hbm [resolvable:$true] %s895
      %898 = dma.vmem_to_hbm [thread:$0]  %s894, 16, %s896, [#allocation13]
    $region53: #{tpu_custom_call.1} parent=1 // pred_fallthru
      _
    // Predicated region
    $region54: #{tpu_custom_call.1} parent=1 // pred_check
      _
    $region55: #{tpu_custom_call.1} parent=1 // pred_check_branch
      %900 = sbr.rel (0) target = $region57
    $region56: #{tpu_custom_call.1} parent=1 // pred_region
      %902 = vsyncadd [#allocation13], 0
      %s904 = sshll.u32 [#allocation14], 4
      %s905 = int_to_ptr.vmem [resolvable:$true] %s904
      %s906 = sshll.u32 %s8, 4
      %s907 = int_to_ptr.hbm [resolvable:$true] %s906
      %909 = dma.vmem_to_hbm [thread:$0]  %s905, 16, %s907, [#allocation13]
    $region57: #{tpu_custom_call.1} parent=1 // pred_fallthru
      _
    // Predicated region
    $region58: #{tpu_custom_call.1} parent=1 // pred_check
      _
    $region59: #{tpu_custom_call.1} parent=1 // pred_check_branch
      %911 = sbr.rel (0) target = $region61
    $region60: #{tpu_custom_call.1} parent=1 // pred_region
      %913 = vsyncadd [#allocation16], 0
      %s915 = sshll.u32 [#allocation15], 4
      %s916 = int_to_ptr.vmem [resolvable:$true] %s915
      %s917 = sshll.u32 %s9, 4
      %s918 = int_to_ptr.hbm [resolvable:$true] %s917
      %920 = dma.vmem_to_hbm [thread:$0]  %s916, 32, %s918, [#allocation16]
    $region61: #{tpu_custom_call.1} parent=1 // pred_fallthru
      _
    // Predicated region
    $region62: #{tpu_custom_call.1} parent=1 // pred_check
      _
    $region63: #{tpu_custom_call.1} parent=1 // pred_check_branch
      %922 = sbr.rel (0) target = $region65
    $region64: #{tpu_custom_call.1} parent=1 // pred_region
      %924 = dma.done [#allocation4], 16
    $region65: #{tpu_custom_call.1} parent=1 // pred_fallthru
      _
    // Predicated region
    $region66: #{tpu_custom_call.1} parent=1 // pred_check
      _
    $region67: #{tpu_custom_call.1} parent=1 // pred_check_branch
      %926 = sbr.rel (0) target = $region69
    $region68: #{tpu_custom_call.1} parent=1 // pred_region
      %928 = dma.done [#allocation13], 16
    $region69: #{tpu_custom_call.1} parent=1 // pred_fallthru
      _
    // Predicated region
    $region70: #{tpu_custom_call.1} parent=1 // pred_check
      _
    $region71: #{tpu_custom_call.1} parent=1 // pred_check_branch
      %930 = sbr.rel (0) target = $region73
    $region72: #{tpu_custom_call.1} parent=1 // pred_region
      %932 = dma.done [#allocation13], 16
    $region73: #{tpu_custom_call.1} parent=1 // pred_fallthru
      _
    // Predicated region
    $region74: #{tpu_custom_call.1} parent=1 // pred_check
      _
    $region75: #{tpu_custom_call.1} parent=1 // pred_check_branch
      %934 = sbr.rel (0) target = $region77
    $region76: #{tpu_custom_call.1} parent=1 // pred_region
      %936 = dma.done [#allocation16], 32
    $region77: #{tpu_custom_call.1} parent=1 // pred_fallthru
      _
    %937 = vsyncpa [#allocation3], 1
    %938 = vsyncpa [#allocation6], 1
    %939 = vsyncpa [#allocation9], 1
    %940 = vsyncpa [#allocation4], 1
    %941 = vsyncpa [#allocation13], 1
    %942 = vsyncpa [#allocation16], 1

</llo_original>
